<compile_context>
chip_gen: v5e
topology: v5e:2x2
jax: 0.10.0
libtpu: 0.0.40
codegen_flags: <defaults>
</compile_context>

<pallas_src>
import functools

import jax
import jax.numpy as jnp
from jax.experimental import pallas as pl
from jax.experimental.pallas import tpu as pltpu


def lstm_head_kernel(x_ref, w_ih_t_ref, w_hh_t_ref, b_ref,
                     w1_t_ref, b1_ref, w2_t_ref, b2_ref, out_ref,
                     *, T, B, H):
    # x_ref:      (T*B, I)  bf16, time-major rows (row t*B+b is time t, batch b)
    # w_ih_t_ref: (I, 4H)   bf16   (W_ih^T, PyTorch gate order [i, f, g, o])
    # w_hh_t_ref: (H, 4H)   bf16   (W_hh^T)
    # b_ref:      (1, 4H)   f32    (b_ih + b_hh)
    # w1_t_ref:   (H, 128)  bf16   (fc1 weight^T),  b1_ref: (1, 128) f32
    # w2_t_ref:   (128, CP) bf16   (fc2 weight^T, class dim padded to CP=128)
    # b2_ref:     (1, CP)   f32    (padded entries = -1e30)
    # out_ref:    (B, CP)   f32    softmax probabilities (padded classes -> 0)

    # --- hoisted input projection: one big MXU matmul for all timesteps ------
    pre = jnp.dot(x_ref[...], w_ih_t_ref[...],
                  preferred_element_type=jnp.float32) + b_ref[...]   # (T*B, 4H) f32

    w_hh_t = w_hh_t_ref[...]                                         # (H, 4H) bf16

    h = jnp.zeros((B, H), jnp.float32)
    c = jnp.zeros((B, H), jnp.float32)

    # --- recurrence, fully unrolled (T is small and static) ------------------
    for t in range(T):
        gates = pre[t * B:(t + 1) * B, :] + jnp.dot(
            h.astype(jnp.bfloat16), w_hh_t,
            preferred_element_type=jnp.float32)                      # (B, 4H) f32
        # Two full-width EUP ops instead of four quarter-lane activations.
        sig = jax.nn.sigmoid(gates)
        th = jnp.tanh(gates)
        i_g = sig[:, 0:H]
        f_g = sig[:, H:2 * H]
        g_g = th[:, 2 * H:3 * H]
        o_g = sig[:, 3 * H:4 * H]
        c = f_g * c + i_g * g_g
        h = o_g * jnp.tanh(c)
    # h == output[:, -1, :] of the PyTorch nn.LSTM

    # --- fc1 -> dropout(eval, identity) -> ReLU ------------------------------
    # TODO(synk): dropout implemented as identity (inference mode).
    hid = jnp.dot(h.astype(jnp.bfloat16), w1_t_ref[...],
                  preferred_element_type=jnp.float32) + b1_ref[...]  # (B, 128)
    hid = jnp.maximum(hid, 0.0)

    # --- fc2 (lane-dense padded classes) -> softmax --------------------------
    logits = jnp.dot(hid.astype(jnp.bfloat16), w2_t_ref[...],
                     preferred_element_type=jnp.float32) + b2_ref[...]  # (B, CP)
    m = jnp.max(logits, axis=-1, keepdims=True)
    e = jnp.exp(logits - m)                       # padded lanes underflow to 0
    out_ref[...] = e / jnp.sum(e, axis=-1, keepdims=True)


def lstm_forward(x, params):
    """x: (B, T, I) batch-first, float32 (PyTorch convention). Returns (B, C)."""
    w_ih, w_hh, b_ih, b_hh, w1, b1, w2, b2 = params
    B, T, I = x.shape
    H = w_hh.shape[1]
    C = w2.shape[0]
    CP = 128  # lane-dense padded class dim (C <= 128 here)

    # Time-major, flattened rows; bf16 operands for the MXU.
    x_flat = jnp.transpose(x, (1, 0, 2)).reshape(T * B, I).astype(jnp.bfloat16)

    # Pre-transpose all weights in XLA (free) so the kernel does no .T.
    w_ih_t = w_ih.T.astype(jnp.bfloat16)                 # (I, 4H)
    w_hh_t = w_hh.T.astype(jnp.bfloat16)                 # (H, 4H)
    b_comb = (b_ih + b_hh).reshape(1, -1)                # (1, 4H) f32
    w1_t = w1.T.astype(jnp.bfloat16)                     # (H, 128)
    b1_2d = b1.reshape(1, -1)                            # (1, 128) f32

    # Pad the class dim of fc2 to 128 lanes; padded logits get -1e30 bias so
    # they contribute exp(...) == 0 to the softmax.
    w2_t_pad = jnp.zeros((128, CP), jnp.float32).at[:, :C].set(w2.T)
    w2_t_pad = w2_t_pad.astype(jnp.bfloat16)             # (128, CP)
    b2_pad = jnp.full((1, CP), -1e30, jnp.float32).at[0, :C].set(b2)

    kernel = functools.partial(lstm_head_kernel, T=T, B=B, H=H)

    out_padded = pl.pallas_call(
        kernel,
        out_shape=jax.ShapeDtypeStruct((B, CP), jnp.float32),
        in_specs=[pl.BlockSpec(memory_space=pltpu.MemorySpace.VMEM)] * 8,
        out_specs=pl.BlockSpec(memory_space=pltpu.MemorySpace.VMEM),
    )(x_flat, w_ih_t, w_hh_t, b_comb, w1_t, b1_2d, w2_t_pad, b2_pad)

    return out_padded[:, :C]


def init_params(key, input_size, hidden_size, num_classes):
    """Deterministic PyTorch-style uniform init for all parameters (f32)."""
    ks = jax.random.split(key, 8)
    k_lstm = 1.0 / jnp.sqrt(hidden_size)
    k_fc1 = 1.0 / jnp.sqrt(hidden_size)
    k_fc2 = 1.0 / jnp.sqrt(128.0)

    def u(k, shape, bound):
        return jax.random.uniform(k, shape, jnp.float32, -bound, bound)

    w_ih = u(ks[0], (4 * hidden_size, input_size), k_lstm)
    w_hh = u(ks[1], (4 * hidden_size, hidden_size), k_lstm)
    b_ih = u(ks[2], (4 * hidden_size,), k_lstm)
    b_hh = u(ks[3], (4 * hidden_size,), k_lstm)
    w1 = u(ks[4], (128, hidden_size), k_fc1)
    b1 = u(ks[5], (128,), k_fc1)
    w2 = u(ks[6], (num_classes, 128), k_fc2)
    b2 = u(ks[7], (num_classes,), k_fc2)
    return (w_ih, w_hh, b_ih, b_hh, w1, b1, w2, b2)


if __name__ == "__main__":
    # Small shapes consistent with the module: batch=2, seq=8, input_size=16,
    # hidden_size=32, num_classes=3.
    B, T, I, H, C = 2, 8, 16, 32, 3

    key = jax.random.PRNGKey(0)
    k_x, k_p = jax.random.split(key)
    x = jax.random.normal(k_x, (B, T, I), jnp.float32)
    params = init_params(k_p, I, H, C)

    out = lstm_forward(x, params)
    out = jax.block_until_ready(out)

    assert out.shape == (B, C)
    assert jnp.allclose(jnp.sum(out, axis=-1), 1.0, atol=1e-5)
    print("KERNEL_OK")
</pallas_src>

<mosaic_0001>
module attributes {stable_mosaic.version = 11 : i64} {
  func.func @lstm_head_kernel(%arg0: memref<16x16xbf16, #tpu.memory_space<vmem>>, %arg1: memref<16x128xbf16, #tpu.memory_space<vmem>>, %arg2: memref<32x128xbf16, #tpu.memory_space<vmem>>, %arg3: memref<1x128xf32, #tpu.memory_space<vmem>>, %arg4: memref<32x128xbf16, #tpu.memory_space<vmem>>, %arg5: memref<1x128xf32, #tpu.memory_space<vmem>>, %arg6: memref<128x128xbf16, #tpu.memory_space<vmem>>, %arg7: memref<1x128xf32, #tpu.memory_space<vmem>>, %arg8: memref<2x128xf32, #tpu.memory_space<vmem>>) attributes {dimension_semantics = [], scalar_prefetch = 0 : i64, scratch_operands = 0 : i64, tpu.core_type = #tpu.core_type<tc>} {
    %c0 = arith.constant 0 : index
    %c0_0 = arith.constant 0 : index
    %0 = vector.load %arg0[%c0, %c0_0] : memref<16x16xbf16, #tpu.memory_space<vmem>>, vector<16x16xbf16>
    %c0_1 = arith.constant 0 : index
    %c0_2 = arith.constant 0 : index
    %1 = vector.load %arg1[%c0_1, %c0_2] : memref<16x128xbf16, #tpu.memory_space<vmem>>, vector<16x128xbf16>
    %cst = arith.constant dense<0.000000e+00> : vector<16x128xf32>
    %2 = tpu.matmul %0, %1, %cst {dimension_numbers = #tpu.dot_dimension_numbers<[1], [0], [0], [1], [0, 0, 1, 1], [], []>} : vector<16x16xbf16>, vector<16x128xbf16>, vector<16x128xf32> -> vector<16x128xf32>
    %c0_3 = arith.constant 0 : index
    %c0_4 = arith.constant 0 : index
    %3 = vector.load %arg3[%c0_3, %c0_4] : memref<1x128xf32, #tpu.memory_space<vmem>>, vector<1x128xf32>
    %4 = vector.broadcast %3 : vector<1x128xf32> to vector<16x128xf32>
    %5 = arith.addf %2, %4 : vector<16x128xf32>
    %c0_5 = arith.constant 0 : index
    %c0_6 = arith.constant 0 : index
    %6 = vector.load %arg2[%c0_5, %c0_6] : memref<32x128xbf16, #tpu.memory_space<vmem>>, vector<32x128xbf16>
    %cst_7 = arith.constant 0.000000e+00 : f32
    %7 = vector.broadcast %cst_7 : f32 to vector<2x32xf32>
    %cst_8 = arith.constant 0.000000e+00 : f32
    %8 = vector.broadcast %cst_8 : f32 to vector<2x32xf32>
    %9 = vector.extract_strided_slice %5 {offsets = [0, 0], sizes = [2, 128], strides = [1, 1]} : vector<16x128xf32> to vector<2x128xf32>
    %10 = arith.truncf %7 : vector<2x32xf32> to vector<2x32xbf16>
    %cst_9 = arith.constant dense<0.000000e+00> : vector<2x128xf32>
    %11 = tpu.matmul %10, %6, %cst_9 {dimension_numbers = #tpu.dot_dimension_numbers<[1], [0], [0], [1], [0, 0, 1, 1], [], []>} : vector<2x32xbf16>, vector<32x128xbf16>, vector<2x128xf32> -> vector<2x128xf32>
    %12 = arith.addf %9, %11 : vector<2x128xf32>
    %13 = arith.negf %12 : vector<2x128xf32>
    %14 = math.exp %13 : vector<2x128xf32>
    %cst_10 = arith.constant 1.000000e+00 : f32
    %15 = vector.broadcast %cst_10 : f32 to vector<2x128xf32>
    %16 = arith.addf %15, %14 : vector<2x128xf32>
    %17 = arith.divf %15, %16 : vector<2x128xf32>
    %18 = math.tanh %12 : vector<2x128xf32>
    %19 = vector.extract_strided_slice %17 {offsets = [0, 0], sizes = [2, 32], strides = [1, 1]} : vector<2x128xf32> to vector<2x32xf32>
    %20 = vector.extract_strided_slice %17 {offsets = [0, 32], sizes = [2, 32], strides = [1, 1]} : vector<2x128xf32> to vector<2x32xf32>
    %21 = vector.extract_strided_slice %18 {offsets = [0, 64], sizes = [2, 32], strides = [1, 1]} : vector<2x128xf32> to vector<2x32xf32>
    %22 = vector.extract_strided_slice %17 {offsets = [0, 96], sizes = [2, 32], strides = [1, 1]} : vector<2x128xf32> to vector<2x32xf32>
    %23 = arith.mulf %20, %8 : vector<2x32xf32>
    %24 = arith.mulf %19, %21 : vector<2x32xf32>
    %25 = arith.addf %23, %24 : vector<2x32xf32>
    %26 = math.tanh %25 : vector<2x32xf32>
    %27 = arith.mulf %22, %26 : vector<2x32xf32>
    %28 = vector.extract_strided_slice %5 {offsets = [2, 0], sizes = [2, 128], strides = [1, 1]} : vector<16x128xf32> to vector<2x128xf32>
    %29 = arith.truncf %27 : vector<2x32xf32> to vector<2x32xbf16>
    %cst_11 = arith.constant dense<0.000000e+00> : vector<2x128xf32>
    %30 = tpu.matmul %29, %6, %cst_11 {dimension_numbers = #tpu.dot_dimension_numbers<[1], [0], [0], [1], [0, 0, 1, 1], [], []>} : vector<2x32xbf16>, vector<32x128xbf16>, vector<2x128xf32> -> vector<2x128xf32>
    %31 = arith.addf %28, %30 : vector<2x128xf32>
    %32 = arith.negf %31 : vector<2x128xf32>
    %33 = math.exp %32 : vector<2x128xf32>
    %cst_12 = arith.constant 1.000000e+00 : f32
    %34 = vector.broadcast %cst_12 : f32 to vector<2x128xf32>
    %35 = arith.addf %34, %33 : vector<2x128xf32>
    %36 = arith.divf %34, %35 : vector<2x128xf32>
    %37 = math.tanh %31 : vector<2x128xf32>
    %38 = vector.extract_strided_slice %36 {offsets = [0, 0], sizes = [2, 32], strides = [1, 1]} : vector<2x128xf32> to vector<2x32xf32>
    %39 = vector.extract_strided_slice %36 {offsets = [0, 32], sizes = [2, 32], strides = [1, 1]} : vector<2x128xf32> to vector<2x32xf32>
    %40 = vector.extract_strided_slice %37 {offsets = [0, 64], sizes = [2, 32], strides = [1, 1]} : vector<2x128xf32> to vector<2x32xf32>
    %41 = vector.extract_strided_slice %36 {offsets = [0, 96], sizes = [2, 32], strides = [1, 1]} : vector<2x128xf32> to vector<2x32xf32>
    %42 = arith.mulf %39, %25 : vector<2x32xf32>
    %43 = arith.mulf %38, %40 : vector<2x32xf32>
    %44 = arith.addf %42, %43 : vector<2x32xf32>
    %45 = math.tanh %44 : vector<2x32xf32>
    %46 = arith.mulf %41, %45 : vector<2x32xf32>
    %47 = vector.extract_strided_slice %5 {offsets = [4, 0], sizes = [2, 128], strides = [1, 1]} : vector<16x128xf32> to vector<2x128xf32>
    %48 = arith.truncf %46 : vector<2x32xf32> to vector<2x32xbf16>
    %cst_13 = arith.constant dense<0.000000e+00> : vector<2x128xf32>
    %49 = tpu.matmul %48, %6, %cst_13 {dimension_numbers = #tpu.dot_dimension_numbers<[1], [0], [0], [1], [0, 0, 1, 1], [], []>} : vector<2x32xbf16>, vector<32x128xbf16>, vector<2x128xf32> -> vector<2x128xf32>
    %50 = arith.addf %47, %49 : vector<2x128xf32>
    %51 = arith.negf %50 : vector<2x128xf32>
    %52 = math.exp %51 : vector<2x128xf32>
    %cst_14 = arith.constant 1.000000e+00 : f32
    %53 = vector.broadcast %cst_14 : f32 to vector<2x128xf32>
    %54 = arith.addf %53, %52 : vector<2x128xf32>
    %55 = arith.divf %53, %54 : vector<2x128xf32>
    %56 = math.tanh %50 : vector<2x128xf32>
    %57 = vector.extract_strided_slice %55 {offsets = [0, 0], sizes = [2, 32], strides = [1, 1]} : vector<2x128xf32> to vector<2x32xf32>
    %58 = vector.extract_strided_slice %55 {offsets = [0, 32], sizes = [2, 32], strides = [1, 1]} : vector<2x128xf32> to vector<2x32xf32>
    %59 = vector.extract_strided_slice %56 {offsets = [0, 64], sizes = [2, 32], strides = [1, 1]} : vector<2x128xf32> to vector<2x32xf32>
    %60 = vector.extract_strided_slice %55 {offsets = [0, 96], sizes = [2, 32], strides = [1, 1]} : vector<2x128xf32> to vector<2x32xf32>
    %61 = arith.mulf %58, %44 : vector<2x32xf32>
    %62 = arith.mulf %57, %59 : vector<2x32xf32>
    %63 = arith.addf %61, %62 : vector<2x32xf32>
    %64 = math.tanh %63 : vector<2x32xf32>
    %65 = arith.mulf %60, %64 : vector<2x32xf32>
    %66 = vector.extract_strided_slice %5 {offsets = [6, 0], sizes = [2, 128], strides = [1, 1]} : vector<16x128xf32> to vector<2x128xf32>
    %67 = arith.truncf %65 : vector<2x32xf32> to vector<2x32xbf16>
    %cst_15 = arith.constant dense<0.000000e+00> : vector<2x128xf32>
    %68 = tpu.matmul %67, %6, %cst_15 {dimension_numbers = #tpu.dot_dimension_numbers<[1], [0], [0], [1], [0, 0, 1, 1], [], []>} : vector<2x32xbf16>, vector<32x128xbf16>, vector<2x128xf32> -> vector<2x128xf32>
    %69 = arith.addf %66, %68 : vector<2x128xf32>
    %70 = arith.negf %69 : vector<2x128xf32>
    %71 = math.exp %70 : vector<2x128xf32>
    %cst_16 = arith.constant 1.000000e+00 : f32
    %72 = vector.broadcast %cst_16 : f32 to vector<2x128xf32>
    %73 = arith.addf %72, %71 : vector<2x128xf32>
    %74 = arith.divf %72, %73 : vector<2x128xf32>
    %75 = math.tanh %69 : vector<2x128xf32>
    %76 = vector.extract_strided_slice %74 {offsets = [0, 0], sizes = [2, 32], strides = [1, 1]} : vector<2x128xf32> to vector<2x32xf32>
    %77 = vector.extract_strided_slice %74 {offsets = [0, 32], sizes = [2, 32], strides = [1, 1]} : vector<2x128xf32> to vector<2x32xf32>
    %78 = vector.extract_strided_slice %75 {offsets = [0, 64], sizes = [2, 32], strides = [1, 1]} : vector<2x128xf32> to vector<2x32xf32>
    %79 = vector.extract_strided_slice %74 {offsets = [0, 96], sizes = [2, 32], strides = [1, 1]} : vector<2x128xf32> to vector<2x32xf32>
    %80 = arith.mulf %77, %63 : vector<2x32xf32>
    %81 = arith.mulf %76, %78 : vector<2x32xf32>
    %82 = arith.addf %80, %81 : vector<2x32xf32>
    %83 = math.tanh %82 : vector<2x32xf32>
    %84 = arith.mulf %79, %83 : vector<2x32xf32>
    %85 = vector.extract_strided_slice %5 {offsets = [8, 0], sizes = [2, 128], strides = [1, 1]} : vector<16x128xf32> to vector<2x128xf32>
    %86 = arith.truncf %84 : vector<2x32xf32> to vector<2x32xbf16>
    %cst_17 = arith.constant dense<0.000000e+00> : vector<2x128xf32>
    %87 = tpu.matmul %86, %6, %cst_17 {dimension_numbers = #tpu.dot_dimension_numbers<[1], [0], [0], [1], [0, 0, 1, 1], [], []>} : vector<2x32xbf16>, vector<32x128xbf16>, vector<2x128xf32> -> vector<2x128xf32>
    %88 = arith.addf %85, %87 : vector<2x128xf32>
    %89 = arith.negf %88 : vector<2x128xf32>
    %90 = math.exp %89 : vector<2x128xf32>
    %cst_18 = arith.constant 1.000000e+00 : f32
    %91 = vector.broadcast %cst_18 : f32 to vector<2x128xf32>
    %92 = arith.addf %91, %90 : vector<2x128xf32>
    %93 = arith.divf %91, %92 : vector<2x128xf32>
    %94 = math.tanh %88 : vector<2x128xf32>
    %95 = vector.extract_strided_slice %93 {offsets = [0, 0], sizes = [2, 32], strides = [1, 1]} : vector<2x128xf32> to vector<2x32xf32>
    %96 = vector.extract_strided_slice %93 {offsets = [0, 32], sizes = [2, 32], strides = [1, 1]} : vector<2x128xf32> to vector<2x32xf32>
    %97 = vector.extract_strided_slice %94 {offsets = [0, 64], sizes = [2, 32], strides = [1, 1]} : vector<2x128xf32> to vector<2x32xf32>
    %98 = vector.extract_strided_slice %93 {offsets = [0, 96], sizes = [2, 32], strides = [1, 1]} : vector<2x128xf32> to vector<2x32xf32>
    %99 = arith.mulf %96, %82 : vector<2x32xf32>
    %100 = arith.mulf %95, %97 : vector<2x32xf32>
    %101 = arith.addf %99, %100 : vector<2x32xf32>
    %102 = math.tanh %101 : vector<2x32xf32>
    %103 = arith.mulf %98, %102 : vector<2x32xf32>
    %104 = vector.extract_strided_slice %5 {offsets = [10, 0], sizes = [2, 128], strides = [1, 1]} : vector<16x128xf32> to vector<2x128xf32>
    %105 = arith.truncf %103 : vector<2x32xf32> to vector<2x32xbf16>
    %cst_19 = arith.constant dense<0.000000e+00> : vector<2x128xf32>
    %106 = tpu.matmul %105, %6, %cst_19 {dimension_numbers = #tpu.dot_dimension_numbers<[1], [0], [0], [1], [0, 0, 1, 1], [], []>} : vector<2x32xbf16>, vector<32x128xbf16>, vector<2x128xf32> -> vector<2x128xf32>
    %107 = arith.addf %104, %106 : vector<2x128xf32>
    %108 = arith.negf %107 : vector<2x128xf32>
    %109 = math.exp %108 : vector<2x128xf32>
    %cst_20 = arith.constant 1.000000e+00 : f32
    %110 = vector.broadcast %cst_20 : f32 to vector<2x128xf32>
    %111 = arith.addf %110, %109 : vector<2x128xf32>
    %112 = arith.divf %110, %111 : vector<2x128xf32>
    %113 = math.tanh %107 : vector<2x128xf32>
    %114 = vector.extract_strided_slice %112 {offsets = [0, 0], sizes = [2, 32], strides = [1, 1]} : vector<2x128xf32> to vector<2x32xf32>
    %115 = vector.extract_strided_slice %112 {offsets = [0, 32], sizes = [2, 32], strides = [1, 1]} : vector<2x128xf32> to vector<2x32xf32>
    %116 = vector.extract_strided_slice %113 {offsets = [0, 64], sizes = [2, 32], strides = [1, 1]} : vector<2x128xf32> to vector<2x32xf32>
    %117 = vector.extract_strided_slice %112 {offsets = [0, 96], sizes = [2, 32], strides = [1, 1]} : vector<2x128xf32> to vector<2x32xf32>
    %118 = arith.mulf %115, %101 : vector<2x32xf32>
    %119 = arith.mulf %114, %116 : vector<2x32xf32>
    %120 = arith.addf %118, %119 : vector<2x32xf32>
    %121 = math.tanh %120 : vector<2x32xf32>
    %122 = arith.mulf %117, %121 : vector<2x32xf32>
    %123 = vector.extract_strided_slice %5 {offsets = [12, 0], sizes = [2, 128], strides = [1, 1]} : vector<16x128xf32> to vector<2x128xf32>
    %124 = arith.truncf %122 : vector<2x32xf32> to vector<2x32xbf16>
    %cst_21 = arith.constant dense<0.000000e+00> : vector<2x128xf32>
    %125 = tpu.matmul %124, %6, %cst_21 {dimension_numbers = #tpu.dot_dimension_numbers<[1], [0], [0], [1], [0, 0, 1, 1], [], []>} : vector<2x32xbf16>, vector<32x128xbf16>, vector<2x128xf32> -> vector<2x128xf32>
    %126 = arith.addf %123, %125 : vector<2x128xf32>
    %127 = arith.negf %126 : vector<2x128xf32>
    %128 = math.exp %127 : vector<2x128xf32>
    %cst_22 = arith.constant 1.000000e+00 : f32
    %129 = vector.broadcast %cst_22 : f32 to vector<2x128xf32>
    %130 = arith.addf %129, %128 : vector<2x128xf32>
    %131 = arith.divf %129, %130 : vector<2x128xf32>
    %132 = math.tanh %126 : vector<2x128xf32>
    %133 = vector.extract_strided_slice %131 {offsets = [0, 0], sizes = [2, 32], strides = [1, 1]} : vector<2x128xf32> to vector<2x32xf32>
    %134 = vector.extract_strided_slice %131 {offsets = [0, 32], sizes = [2, 32], strides = [1, 1]} : vector<2x128xf32> to vector<2x32xf32>
    %135 = vector.extract_strided_slice %132 {offsets = [0, 64], sizes = [2, 32], strides = [1, 1]} : vector<2x128xf32> to vector<2x32xf32>
    %136 = vector.extract_strided_slice %131 {offsets = [0, 96], sizes = [2, 32], strides = [1, 1]} : vector<2x128xf32> to vector<2x32xf32>
    %137 = arith.mulf %134, %120 : vector<2x32xf32>
    %138 = arith.mulf %133, %135 : vector<2x32xf32>
    %139 = arith.addf %137, %138 : vector<2x32xf32>
    %140 = math.tanh %139 : vector<2x32xf32>
    %141 = arith.mulf %136, %140 : vector<2x32xf32>
    %142 = vector.extract_strided_slice %5 {offsets = [14, 0], sizes = [2, 128], strides = [1, 1]} : vector<16x128xf32> to vector<2x128xf32>
    %143 = arith.truncf %141 : vector<2x32xf32> to vector<2x32xbf16>
    %cst_23 = arith.constant dense<0.000000e+00> : vector<2x128xf32>
    %144 = tpu.matmul %143, %6, %cst_23 {dimension_numbers = #tpu.dot_dimension_numbers<[1], [0], [0], [1], [0, 0, 1, 1], [], []>} : vector<2x32xbf16>, vector<32x128xbf16>, vector<2x128xf32> -> vector<2x128xf32>
    %145 = arith.addf %142, %144 : vector<2x128xf32>
    %146 = arith.negf %145 : vector<2x128xf32>
    %147 = math.exp %146 : vector<2x128xf32>
    %cst_24 = arith.constant 1.000000e+00 : f32
    %148 = vector.broadcast %cst_24 : f32 to vector<2x128xf32>
    %149 = arith.addf %148, %147 : vector<2x128xf32>
    %150 = arith.divf %148, %149 : vector<2x128xf32>
    %151 = math.tanh %145 : vector<2x128xf32>
    %152 = vector.extract_strided_slice %150 {offsets = [0, 0], sizes = [2, 32], strides = [1, 1]} : vector<2x128xf32> to vector<2x32xf32>
    %153 = vector.extract_strided_slice %150 {offsets = [0, 32], sizes = [2, 32], strides = [1, 1]} : vector<2x128xf32> to vector<2x32xf32>
    %154 = vector.extract_strided_slice %151 {offsets = [0, 64], sizes = [2, 32], strides = [1, 1]} : vector<2x128xf32> to vector<2x32xf32>
    %155 = vector.extract_strided_slice %150 {offsets = [0, 96], sizes = [2, 32], strides = [1, 1]} : vector<2x128xf32> to vector<2x32xf32>
    %156 = arith.mulf %153, %139 : vector<2x32xf32>
    %157 = arith.mulf %152, %154 : vector<2x32xf32>
    %158 = arith.addf %156, %157 : vector<2x32xf32>
    %159 = math.tanh %158 : vector<2x32xf32>
    %160 = arith.mulf %155, %159 : vector<2x32xf32>
    %161 = arith.truncf %160 : vector<2x32xf32> to vector<2x32xbf16>
    %c0_25 = arith.constant 0 : index
    %c0_26 = arith.constant 0 : index
    %162 = vector.load %arg4[%c0_25, %c0_26] : memref<32x128xbf16, #tpu.memory_space<vmem>>, vector<32x128xbf16>
    %cst_27 = arith.constant dense<0.000000e+00> : vector<2x128xf32>
    %163 = tpu.matmul %161, %162, %cst_27 {dimension_numbers = #tpu.dot_dimension_numbers<[1], [0], [0], [1], [0, 0, 1, 1], [], []>} : vector<2x32xbf16>, vector<32x128xbf16>, vector<2x128xf32> -> vector<2x128xf32>
    %c0_28 = arith.constant 0 : index
    %c0_29 = arith.constant 0 : index
    %164 = vector.load %arg5[%c0_28, %c0_29] : memref<1x128xf32, #tpu.memory_space<vmem>>, vector<1x128xf32>
    %165 = vector.broadcast %164 : vector<1x128xf32> to vector<2x128xf32>
    %166 = arith.addf %163, %165 : vector<2x128xf32>
    %cst_30 = arith.constant 0.000000e+00 : f32
    %167 = vector.broadcast %cst_30 : f32 to vector<2x128xf32>
    %168 = arith.maximumf %166, %167 : vector<2x128xf32>
    %169 = arith.truncf %168 : vector<2x128xf32> to vector<2x128xbf16>
    %c0_31 = arith.constant 0 : index
    %c0_32 = arith.constant 0 : index
    %170 = vector.load %arg6[%c0_31, %c0_32] : memref<128x128xbf16, #tpu.memory_space<vmem>>, vector<128x128xbf16>
    %cst_33 = arith.constant dense<0.000000e+00> : vector<2x128xf32>
    %171 = tpu.matmul %169, %170, %cst_33 {dimension_numbers = #tpu.dot_dimension_numbers<[1], [0], [0], [1], [0, 0, 1, 1], [], []>} : vector<2x128xbf16>, vector<128x128xbf16>, vector<2x128xf32> -> vector<2x128xf32>
    %c0_34 = arith.constant 0 : index
    %c0_35 = arith.constant 0 : index
    %172 = vector.load %arg7[%c0_34, %c0_35] : memref<1x128xf32, #tpu.memory_space<vmem>>, vector<1x128xf32>
    %173 = vector.broadcast %172 : vector<1x128xf32> to vector<2x128xf32>
    %174 = arith.addf %171, %173 : vector<2x128xf32>
    %cst_36 = arith.constant dense<0xFF800000> : vector<2xf32>
    %175 = vector.multi_reduction <maximumf>, %174, %cst_36 [1] : vector<2x128xf32> to vector<2xf32>
    %176 = vector.shape_cast %175 : vector<2xf32> to vector<2x1xf32>
    %177 = vector.broadcast %176 : vector<2x1xf32> to vector<2x128xf32>
    %178 = arith.subf %174, %177 : vector<2x128xf32>
    %179 = math.exp %178 : vector<2x128xf32>
    %cst_37 = arith.constant dense<0.000000e+00> : vector<2xf32>
    %180 = vector.multi_reduction <add>, %179, %cst_37 [1] : vector<2x128xf32> to vector<2xf32>
    %181 = vector.shape_cast %180 : vector<2xf32> to vector<2x1xf32>
    %182 = vector.broadcast %181 : vector<2x1xf32> to vector<2x128xf32>
    %183 = arith.divf %179, %182 : vector<2x128xf32>
    %c0_38 = arith.constant 0 : index
    %c0_39 = arith.constant 0 : index
    %184 = vector.load %arg8[%c0_38, %c0_39] : memref<2x128xf32, #tpu.memory_space<vmem>>, vector<2x128xf32>
    tpu.vector_store %arg8[%c0_38, %c0_39], %183 {strides = array<i32>} : memref<2x128xf32, #tpu.memory_space<vmem>>, vector<2x128xf32>,
    return
  }
}

</mosaic_0001>

<llo_original>
// kernel: tpu_custom_call.1
$region0: #{tpu_custom_call.1}
  #allocation0 [shape = 'u32[]', space=smem, size = 0x4, offset = 0x4, fixed_abs, tag = 'smem constant byte address 0x4 - core index']
  #allocation1 [shape = 'u32[72,128]{1,0:T(1,128)}', space=vmem, size = 0x9000, scoped, tag = 'internal scratch']
  %s0 = inlined_call_operand.hbm [shape: bf16[16,16], index: 0, kind: input, shape index: {}]
  %s1 = inlined_call_operand.hbm [shape: bf16[16,128], index: 1, kind: input, shape index: {}]
  %s2 = inlined_call_operand.hbm [shape: bf16[32,128], index: 2, kind: input, shape index: {}]
  %s3 = inlined_call_operand.vmem [shape: f32[1,128], index: 3, kind: input, shape index: {}]
  %s4 = inlined_call_operand.hbm [shape: bf16[32,128], index: 4, kind: input, shape index: {}]
  %s5 = inlined_call_operand.vmem [shape: f32[1,128], index: 5, kind: input, shape index: {}]
  %s6 = inlined_call_operand.hbm [shape: bf16[128,128], index: 6, kind: input, shape index: {}]
  %s7 = inlined_call_operand.vmem [shape: f32[1,128], index: 7, kind: input, shape index: {}]
  %s8 = inlined_call_operand.hbm [shape: f32[2,128], index: 8, kind: output, shape index: {}]
  %s9 = sld [smem:[#allocation0]]
  $region62: #{tpu_custom_call.1} parent=0
    _
  %s11 = ssub.s32 1, %s9
  %s12 = scalar_select 0, %s11, %s9
  $region1: #{tpu_custom_call.1} parent=0
    #allocation2 [shape = 'u8[4096]{0}', space=vmem, size = 0x1000, scoped, tag = 'input window, operand 0, single buffered']
    #allocation3 [shape = 's32[1]{0}', space=sflag, size = 0x4, scoped, tag = 'scoped memory for tpu_custom_call.1']
    #allocation4 [shape = 's32[1]{0}', space=sflag, size = 0x4, scoped, tag = 'scoped memory for tpu_custom_call.1']
    #allocation5 [shape = 'u8[4096]{0}', space=vmem, size = 0x1000, scoped, tag = 'input window, operand 1, single buffered']
    #allocation6 [shape = 's32[1]{0}', space=sflag, size = 0x4, scoped, tag = 'scoped memory for tpu_custom_call.1']
    #allocation7 [shape = 'u8[8192]{0}', space=vmem, size = 0x2000, scoped, tag = 'input window, operand 2, single buffered']
    #allocation8 [shape = 'u8[8192]{0}', space=vmem, size = 0x2000, scoped, tag = 'input window, operand 4, single buffered']
    #allocation9 [shape = 's32[1]{0}', space=sflag, size = 0x4, scoped, tag = 'scoped memory for tpu_custom_call.1']
    #allocation10 [shape = 'u8[32768]{0}', space=vmem, size = 0x8000, scoped, tag = 'input window, operand 6, single buffered']
    #allocation11 [shape = 'u8[1024]{0}', space=vmem, size = 0x400, scoped, tag = 'output window, operand 0, single buffered']
    %13 = vsyncpa [#allocation3], 0
    %14 = vsyncpa [#allocation6], 0
    %15 = vsyncpa [#allocation9], 0
    %16 = vsyncpa [#allocation4], 0
    // Predicated region
    $region2: #{tpu_custom_call.1} parent=1 // pred_check
      _
    $region3: #{tpu_custom_call.1} parent=1 // pred_check_branch
      %18 = sbr.rel (0) target = $region5
    $region4: #{tpu_custom_call.1} parent=1 // pred_region
      %20 = vsyncadd [#allocation3], 0
      %s21 = sshll.u32 %s0, 4
      %s22 = int_to_ptr.hbm [resolvable:$true] %s21
      %s23 = sshll.u32 [#allocation2], 4
      %s24 = int_to_ptr.vmem [resolvable:$true] %s23
      %29 = dma.hbm_to_vmem [thread:$0]  %s22, 128, %s24, [#allocation3], 64, 64, 4
    $region5: #{tpu_custom_call.1} parent=1 // pred_fallthru
      _
    // Predicated region
    $region6: #{tpu_custom_call.1} parent=1 // pred_check
      _
    $region7: #{tpu_custom_call.1} parent=1 // pred_check_branch
      %31 = sbr.rel (0) target = $region9
    $region8: #{tpu_custom_call.1} parent=1 // pred_region
      %33 = vsyncadd [#allocation6], 0
      %s34 = sshll.u32 %s1, 4
      %s35 = int_to_ptr.hbm [resolvable:$true] %s34
      %s36 = sshll.u32 [#allocation5], 4
      %s37 = int_to_ptr.vmem [resolvable:$true] %s36
      %42 = dma.hbm_to_vmem [thread:$0]  %s35, 128, %s37, [#allocation6], 64, 64, 4
    $region9: #{tpu_custom_call.1} parent=1 // pred_fallthru
      _
    // Predicated region
    $region10: #{tpu_custom_call.1} parent=1 // pred_check
      _
    $region11: #{tpu_custom_call.1} parent=1 // pred_check_branch
      %44 = sbr.rel (0) target = $region13
    $region12: #{tpu_custom_call.1} parent=1 // pred_region
      %46 = vsyncadd [#allocation6], 0
      %s47 = sshll.u32 %s2, 4
      %s48 = int_to_ptr.hbm [resolvable:$true] %s47
      %s49 = sshll.u32 [#allocation7], 4
      %s50 = int_to_ptr.vmem [resolvable:$true] %s49
      %55 = dma.hbm_to_vmem [thread:$0]  %s48, 256, %s50, [#allocation6], 64, 64, 4
    $region13: #{tpu_custom_call.1} parent=1 // pred_fallthru
      _
    // Predicated region
    $region14: #{tpu_custom_call.1} parent=1 // pred_check
      _
    $region15: #{tpu_custom_call.1} parent=1 // pred_check_branch
      %57 = sbr.rel (0) target = $region17
    $region16: #{tpu_custom_call.1} parent=1 // pred_region
      _
    $region17: #{tpu_custom_call.1} parent=1 // pred_fallthru
      _
    // Predicated region
    $region18: #{tpu_custom_call.1} parent=1 // pred_check
      _
    $region19: #{tpu_custom_call.1} parent=1 // pred_check_branch
      %59 = sbr.rel (0) target = $region21
    $region20: #{tpu_custom_call.1} parent=1 // pred_region
      %61 = vsyncadd [#allocation9], 0
      %s62 = sshll.u32 %s4, 4
      %s63 = int_to_ptr.hbm [resolvable:$true] %s62
      %s64 = sshll.u32 [#allocation8], 4
      %s65 = int_to_ptr.vmem [resolvable:$true] %s64
      %70 = dma.hbm_to_vmem [thread:$0]  %s63, 256, %s65, [#allocation9], 64, 64, 4
    $region21: #{tpu_custom_call.1} parent=1 // pred_fallthru
      _
    // Predicated region
    $region22: #{tpu_custom_call.1} parent=1 // pred_check
      _
    $region23: #{tpu_custom_call.1} parent=1 // pred_check_branch
      %72 = sbr.rel (0) target = $region25
    $region24: #{tpu_custom_call.1} parent=1 // pred_region
      _
    $region25: #{tpu_custom_call.1} parent=1 // pred_fallthru
      _
    // Predicated region
    $region26: #{tpu_custom_call.1} parent=1 // pred_check
      _
    $region27: #{tpu_custom_call.1} parent=1 // pred_check_branch
      %74 = sbr.rel (0) target = $region29
    $region28: #{tpu_custom_call.1} parent=1 // pred_region
      %76 = vsyncadd [#allocation9], 0
      %s77 = sshll.u32 %s6, 4
      %s78 = int_to_ptr.hbm [resolvable:$true] %s77
      %s79 = sshll.u32 [#allocation10], 4
      %s80 = int_to_ptr.vmem [resolvable:$true] %s79
      %85 = dma.hbm_to_vmem [thread:$0]  %s78, 1024, %s80, [#allocation9], 64, 64, 4
    $region29: #{tpu_custom_call.1} parent=1 // pred_fallthru
      _
    // Predicated region
    $region30: #{tpu_custom_call.1} parent=1 // pred_check
      _
    $region31: #{tpu_custom_call.1} parent=1 // pred_check_branch
      %87 = sbr.rel (0) target = $region33
    $region32: #{tpu_custom_call.1} parent=1 // pred_region
      _
    $region33: #{tpu_custom_call.1} parent=1 // pred_fallthru
      _
    // Predicated region
    $region34: #{tpu_custom_call.1} parent=1 // pred_check
      _
    $region35: #{tpu_custom_call.1} parent=1 // pred_check_branch
      %89 = sbr.rel (0) target = $region37
    $region36: #{tpu_custom_call.1} parent=1 // pred_region
      %91 = dma.done [#allocation3], 128
    $region37: #{tpu_custom_call.1} parent=1 // pred_fallthru
      _
    // Predicated region
    $region38: #{tpu_custom_call.1} parent=1 // pred_check
      _
    $region39: #{tpu_custom_call.1} parent=1 // pred_check_branch
      %93 = sbr.rel (0) target = $region41
    $region40: #{tpu_custom_call.1} parent=1 // pred_region
      %95 = dma.done [#allocation6], 128
    $region41: #{tpu_custom_call.1} parent=1 // pred_fallthru
      _
    // Predicated region
    $region42: #{tpu_custom_call.1} parent=1 // pred_check
      _
    $region43: #{tpu_custom_call.1} parent=1 // pred_check_branch
      %97 = sbr.rel (0) target = $region45
    $region44: #{tpu_custom_call.1} parent=1 // pred_region
      %99 = dma.done [#allocation6], 256
    $region45: #{tpu_custom_call.1} parent=1 // pred_fallthru
      _
    // Predicated region
    $region46: #{tpu_custom_call.1} parent=1 // pred_check
      _
    $region47: #{tpu_custom_call.1} parent=1 // pred_check_branch
      %101 = sbr.rel (0) target = $region49
    $region48: #{tpu_custom_call.1} parent=1 // pred_region
      %103 = dma.done [#allocation9], 256
    $region49: #{tpu_custom_call.1} parent=1 // pred_fallthru
      _
    // Predicated region
    $region50: #{tpu_custom_call.1} parent=1 // pred_check
      _
    $region51: #{tpu_custom_call.1} parent=1 // pred_check_branch
      %105 = sbr.rel (0) target = $region53
    $region52: #{tpu_custom_call.1} parent=1 // pred_region
      %107 = dma.done [#allocation9], 1024
    $region53: #{tpu_custom_call.1} parent=1 // pred_fallthru
      _
    %v109 = vld [vmem:[#allocation2] sm:$0xf]
    %v110 = vld [vmem:[#allocation2 + $0x4] sm:$0xf]
    %v111 = vld [vmem:[#allocation5] sm:$0xf]
    %v112 = vld [vmem:[#allocation5 + $0x4] sm:$0xf]
    %v113 = vld [vmem:[%s3] sm:$0x1]
    %v115 = vperm.slane %v113, 0
    %v119 = vunpack.c.l.b16 %v109
    %v120 = vunpack.c.l.b16 %v110
    %v121 = vpack.c.b16 %v120, %v119
    %v124 = vunpack.c.l.b16 %v111
    %v125 = vunpack.c.l.b16 %v112
    %v126 = vpack.c.b16 %v125, %v124
    %vm128 = vcmask 130048
    %v130 = vsel %vm128, %v121, 0
    %132 = vmatpush.bf16.msra.mxu0 0
    %133 = vmatpush.bf16.msra.mxu0 0
    %134 = vmatpush.bf16.msra.mxu0 0
    %135 = vmatpush.bf16.msra.mxu0 0
    %136 = vmatpush.bf16.msra.mxu0 0
    %137 = vmatpush.bf16.msra.mxu0 0
    %138 = vmatpush.bf16.msra.mxu0 0
    %139 = vmatpush.bf16.msra.mxu0 %v126
    %140 = vmatmul.bf16.gmra.mxu0 %v130
    %v141 = vpop.f32.mrf.mxu0
    %v142 = vadd.f32 %v115, %v141
    %v143 = vpop.f32.mrf.mxu0
    %v144 = vadd.f32 %v115, %v143
    %145 = vdwg.mxu0
    %v146 = vld [vmem:[#allocation7] sm:$0xf]
    %v147 = vld [vmem:[#allocation7 + $0x4] sm:$0xf]
    %v148 = vld [vmem:[#allocation7 + $0x8] sm:$0xf]
    %v149 = vld [vmem:[#allocation7 + $0xc] sm:$0xf]
    %v154 = vunpack.c.l.b16 %v146
    %v155 = vunpack.c.l.b16 %v147
    %v156 = vunpack.c.l.b16 %v148
    %v157 = vunpack.c.l.b16 %v149
    %v158 = vpack.c.b16 %v155, %v154
    %v159 = vpack.c.b16 %v157, %v156
    %vm162 = vcmask 261120
    %v164 = vsel %vm162, 0, 0
    %166 = vmatpush.bf16.msra.mxu0 0
    %167 = vmatpush.bf16.msra.mxu0 0
    %168 = vmatpush.bf16.msra.mxu0 0
    %169 = vmatpush.bf16.msra.mxu0 0
    %170 = vmatpush.bf16.msra.mxu0 0
    %171 = vmatpush.bf16.msra.mxu0 0
    %172 = vmatpush.bf16.msra.mxu0 %v159
    %173 = vmatpush.bf16.msra.mxu0 %v158
    %174 = vmatmul.bf16.gmra.mxu0 %v164
    %v175 = vpop.f32.mrf.mxu0
    %v176 = vadd.f32 0.0, %v175
    %v177 = vpop.f32.mrf.mxu0
    %178 = vdwg.mxu0
    %v179 = vadd.f32 %v142, %v176
    %v180 = vxor.u32 %v179, 2147483648
    %v181 = vmul.f32 %v180, 1.442695
    %v182 = vpow.pop %v181
    %v183 = vadd.f32 %v182, 1.0
    %v184 = vrcp.pop %v183
    %v185 = vmul.f32 %v183, %v184
    %v186 = vsub.f32 1.0, %v185
    %v187 = vmul.f32 %v184, %v186
    %v188 = vadd.f32 %v184, %v187
    %vm189 = vweird.f32 %v183
    %vm190 = vweird.f32 %v184
    %vm191 = vmor %vm189, %vm190
    %v192 = vsel %vm191, %v184, %v188
    %v193 = vand.u32 2147483647, %v183
    %vm194 = vcmp.eq.f32.partialorder %v193, 8.507059e+37
    %v195 = vand.u32 %v183, 2147483648
    %v196 = vor.u32 1.1754944e-38, %v195
    %v197 = vsel %vm194, %v196, %v192
    %v198 = vmul.f32 1.0, %v197
    %v199 = vtanh.pop %v179
    %v200 = vmul.f32 %v198, 0.0
    %202 = vrot.lane.b32.xlu0 %v199, 64
    %v203 = vpop.permute.xlu0 %202
    %v205 = vmul.f32 %v198, %v203
    %207 = vrot.lane.b32.xlu0 %v205, 32
    %v208 = vpop.permute.xlu0 %207
    %v210 = vadd.f32 %v200, %v208
    %v211 = vtanh.pop %v210
    %213 = vrot.lane.b32.xlu0 %v211, 64
    %v214 = vpop.permute.xlu0 %213
    %v216 = vmul.f32 %v198, %v214
    %v217 = vpack.c.bf16 %v216, %v216
    %219 = vrot.lane.b32.xlu0 %v217, 32
    %v220 = vpop.permute.xlu0 %219
    %v222 = vsel %vm162, %v220, 0
    %224 = vmatpush.bf16.msra.mxu0 0
    %225 = vmatpush.bf16.msra.mxu0 0
    %226 = vmatpush.bf16.msra.mxu0 0
    %227 = vmatpush.bf16.msra.mxu0 0
    %228 = vmatpush.bf16.msra.mxu0 0
    %229 = vmatpush.bf16.msra.mxu0 0
    %230 = vmatpush.bf16.msra.mxu0 %v159
    %231 = vmatpush.bf16.msra.mxu0 %v158
    %232 = vmatmul.bf16.gmra.mxu0 %v222
    %v233 = vpop.f32.mrf.mxu0
    %v234 = vadd.f32 0.0, %v233
    %v235 = vpop.f32.mrf.mxu0
    %236 = vdwg.mxu0
    %v238 = vrot.slane %v234, 6
    %v240 = vadd.f32 %v142, %v238
    %v241 = vxor.u32 %v240, 2147483648
    %v242 = vmul.f32 %v241, 1.442695
    %v243 = vpow.pop %v242
    %v244 = vadd.f32 %v243, 1.0
    %v245 = vrcp.pop %v244
    %v246 = vmul.f32 %v244, %v245
    %v247 = vsub.f32 1.0, %v246
    %v248 = vmul.f32 %v245, %v247
    %v249 = vadd.f32 %v245, %v248
    %vm250 = vweird.f32 %v244
    %vm251 = vweird.f32 %v245
    %vm252 = vmor %vm250, %vm251
    %v253 = vsel %vm252, %v245, %v249
    %v254 = vand.u32 2147483647, %v244
    %vm255 = vcmp.eq.f32.partialorder %v254, 8.507059e+37
    %v256 = vand.u32 %v244, 2147483648
    %v257 = vor.u32 1.1754944e-38, %v256
    %v258 = vsel %vm255, %v257, %v253
    %v259 = vmul.f32 1.0, %v258
    %v260 = vtanh.pop %v240
    %v262 = vrot.slane %v210, 6
    %v264 = vmul.f32 %v259, %v262
    %266 = vrot.lane.b32.xlu0 %v260, 64
    %v267 = vpop.permute.xlu0 %266
    %v269 = vmul.f32 %v259, %v267
    %271 = vrot.lane.b32.xlu0 %v269, 32
    %v272 = vpop.permute.xlu0 %271
    %v274 = vadd.f32 %v264, %v272
    %v275 = vtanh.pop %v274
    %277 = vrot.lane.b32.xlu0 %v275, 64
    %v278 = vpop.permute.xlu0 %277
    %v280 = vmul.f32 %v259, %v278
    %v281 = vpack.c.bf16 %v280, %v280
    %v283 = vrot.slane %v281, 1
    %284 = vrot.lane.b32.xlu0 %v283, 32
    %v285 = vpop.permute.xlu0 %284
    %v287 = vsel %vm162, %v285, 0
    %289 = vmatpush.bf16.msra.mxu0 0
    %290 = vmatpush.bf16.msra.mxu0 0
    %291 = vmatpush.bf16.msra.mxu0 0
    %292 = vmatpush.bf16.msra.mxu0 0
    %293 = vmatpush.bf16.msra.mxu0 0
    %294 = vmatpush.bf16.msra.mxu0 0
    %295 = vmatpush.bf16.msra.mxu0 %v159
    %296 = vmatpush.bf16.msra.mxu0 %v158
    %297 = vmatmul.bf16.gmra.mxu0 %v287
    %v298 = vpop.f32.mrf.mxu0
    %v299 = vadd.f32 0.0, %v298
    %v300 = vpop.f32.mrf.mxu0
    %301 = vdwg.mxu0
    %v303 = vrot.slane %v299, 4
    %v305 = vadd.f32 %v142, %v303
    %v306 = vxor.u32 %v305, 2147483648
    %v307 = vmul.f32 %v306, 1.442695
    %v308 = vpow.pop %v307
    %v309 = vadd.f32 %v308, 1.0
    %v310 = vrcp.pop %v309
    %v311 = vmul.f32 %v309, %v310
    %v312 = vsub.f32 1.0, %v311
    %v313 = vmul.f32 %v310, %v312
    %v314 = vadd.f32 %v310, %v313
    %vm315 = vweird.f32 %v309
    %vm316 = vweird.f32 %v310
    %vm317 = vmor %vm315, %vm316
    %v318 = vsel %vm317, %v310, %v314
    %v319 = vand.u32 2147483647, %v309
    %vm320 = vcmp.eq.f32.partialorder %v319, 8.507059e+37
    %v321 = vand.u32 %v309, 2147483648
    %v322 = vor.u32 1.1754944e-38, %v321
    %v323 = vsel %vm320, %v322, %v318
    %v324 = vmul.f32 1.0, %v323
    %v325 = vtanh.pop %v305
    %v327 = vrot.slane %v274, 6
    %v329 = vmul.f32 %v324, %v327
    %331 = vrot.lane.b32.xlu0 %v325, 64
    %v332 = vpop.permute.xlu0 %331
    %v334 = vmul.f32 %v324, %v332
    %336 = vrot.lane.b32.xlu0 %v334, 32
    %v337 = vpop.permute.xlu0 %336
    %v339 = vadd.f32 %v329, %v337
    %v340 = vtanh.pop %v339
    %342 = vrot.lane.b32.xlu0 %v340, 64
    %v343 = vpop.permute.xlu0 %342
    %v345 = vmul.f32 %v324, %v343
    %v346 = vpack.c.bf16 %v345, %v345
    %v348 = vrot.slane %v346, 2
    %349 = vrot.lane.b32.xlu0 %v348, 32
    %v350 = vpop.permute.xlu0 %349
    %v352 = vsel %vm162, %v350, 0
    %354 = vmatpush.bf16.msra.mxu0 0
    %355 = vmatpush.bf16.msra.mxu0 0
    %356 = vmatpush.bf16.msra.mxu0 0
    %357 = vmatpush.bf16.msra.mxu0 0
    %358 = vmatpush.bf16.msra.mxu0 0
    %359 = vmatpush.bf16.msra.mxu0 0
    %360 = vmatpush.bf16.msra.mxu0 %v159
    %361 = vmatpush.bf16.msra.mxu0 %v158
    %362 = vmatmul.bf16.gmra.mxu0 %v352
    %v363 = vpop.f32.mrf.mxu0
    %v364 = vadd.f32 0.0, %v363
    %v365 = vpop.f32.mrf.mxu0
    %366 = vdwg.mxu0
    %v368 = vrot.slane %v364, 2
    %v370 = vadd.f32 %v142, %v368
    %v371 = vxor.u32 %v370, 2147483648
    %v372 = vmul.f32 %v371, 1.442695
    %v373 = vpow.pop %v372
    %v374 = vadd.f32 %v373, 1.0
    %v375 = vrcp.pop %v374
    %v376 = vmul.f32 %v374, %v375
    %v377 = vsub.f32 1.0, %v376
    %v378 = vmul.f32 %v375, %v377
    %v379 = vadd.f32 %v375, %v378
    %vm380 = vweird.f32 %v374
    %vm381 = vweird.f32 %v375
    %vm382 = vmor %vm380, %vm381
    %v383 = vsel %vm382, %v375, %v379
    %v384 = vand.u32 2147483647, %v374
    %vm385 = vcmp.eq.f32.partialorder %v384, 8.507059e+37
    %v386 = vand.u32 %v374, 2147483648
    %v387 = vor.u32 1.1754944e-38, %v386
    %v388 = vsel %vm385, %v387, %v383
    %v389 = vmul.f32 1.0, %v388
    %v390 = vtanh.pop %v370
    %v392 = vrot.slane %v339, 6
    %v394 = vmul.f32 %v389, %v392
    %396 = vrot.lane.b32.xlu0 %v390, 64
    %v397 = vpop.permute.xlu0 %396
    %v399 = vmul.f32 %v389, %v397
    %401 = vrot.lane.b32.xlu0 %v399, 32
    %v402 = vpop.permute.xlu0 %401
    %v404 = vadd.f32 %v394, %v402
    %v405 = vtanh.pop %v404
    %407 = vrot.lane.b32.xlu0 %v405, 64
    %v408 = vpop.permute.xlu0 %407
    %v410 = vmul.f32 %v389, %v408
    %v411 = vpack.c.bf16 %v410, %v410
    %v413 = vrot.slane %v411, 3
    %414 = vrot.lane.b32.xlu0 %v413, 32
    %v415 = vpop.permute.xlu0 %414
    %v417 = vsel %vm162, %v415, 0
    %419 = vmatpush.bf16.msra.mxu0 0
    %420 = vmatpush.bf16.msra.mxu0 0
    %421 = vmatpush.bf16.msra.mxu0 0
    %422 = vmatpush.bf16.msra.mxu0 0
    %423 = vmatpush.bf16.msra.mxu0 0
    %424 = vmatpush.bf16.msra.mxu0 0
    %425 = vmatpush.bf16.msra.mxu0 %v159
    %426 = vmatpush.bf16.msra.mxu0 %v158
    %427 = vmatmul.bf16.gmra.mxu0 %v417
    %v428 = vpop.f32.mrf.mxu0
    %v429 = vadd.f32 0.0, %v428
    %v430 = vpop.f32.mrf.mxu0
    %431 = vdwg.mxu0
    %v432 = vadd.f32 %v144, %v429
    %v433 = vxor.u32 %v432, 2147483648
    %v434 = vmul.f32 %v433, 1.442695
    %v435 = vpow.pop %v434
    %v436 = vadd.f32 %v435, 1.0
    %v437 = vrcp.pop %v436
    %v438 = vmul.f32 %v436, %v437
    %v439 = vsub.f32 1.0, %v438
    %v440 = vmul.f32 %v437, %v439
    %v441 = vadd.f32 %v437, %v440
    %vm442 = vweird.f32 %v436
    %vm443 = vweird.f32 %v437
    %vm444 = vmor %vm442, %vm443
    %v445 = vsel %vm444, %v437, %v441
    %v446 = vand.u32 2147483647, %v436
    %vm447 = vcmp.eq.f32.partialorder %v446, 8.507059e+37
    %v448 = vand.u32 %v436, 2147483648
    %v449 = vor.u32 1.1754944e-38, %v448
    %v450 = vsel %vm447, %v449, %v445
    %v451 = vmul.f32 1.0, %v450
    %v452 = vtanh.pop %v432
    %v454 = vrot.slane %v404, 6
    %v456 = vmul.f32 %v451, %v454
    %458 = vrot.lane.b32.xlu0 %v452, 64
    %v459 = vpop.permute.xlu0 %458
    %v461 = vmul.f32 %v451, %v459
    %463 = vrot.lane.b32.xlu0 %v461, 32
    %v464 = vpop.permute.xlu0 %463
    %v466 = vadd.f32 %v456, %v464
    %v467 = vtanh.pop %v466
    %469 = vrot.lane.b32.xlu0 %v467, 64
    %v470 = vpop.permute.xlu0 %469
    %v472 = vmul.f32 %v451, %v470
    %v473 = vpack.c.bf16 %v472, %v472
    %475 = vrot.lane.b32.xlu0 %v473, 32
    %v476 = vpop.permute.xlu0 %475
    %v478 = vsel %vm162, %v476, 0
    %480 = vmatpush.bf16.msra.mxu0 0
    %481 = vmatpush.bf16.msra.mxu0 0
    %482 = vmatpush.bf16.msra.mxu0 0
    %483 = vmatpush.bf16.msra.mxu0 0
    %484 = vmatpush.bf16.msra.mxu0 0
    %485 = vmatpush.bf16.msra.mxu0 0
    %486 = vmatpush.bf16.msra.mxu0 %v159
    %487 = vmatpush.bf16.msra.mxu0 %v158
    %488 = vmatmul.bf16.gmra.mxu0 %v478
    %v489 = vpop.f32.mrf.mxu0
    %v490 = vadd.f32 0.0, %v489
    %v491 = vpop.f32.mrf.mxu0
    %492 = vdwg.mxu0
    %v494 = vrot.slane %v490, 6
    %v496 = vadd.f32 %v144, %v494
    %v497 = vxor.u32 %v496, 2147483648
    %v498 = vmul.f32 %v497, 1.442695
    %v499 = vpow.pop %v498
    %v500 = vadd.f32 %v499, 1.0
    %v501 = vrcp.pop %v500
    %v502 = vmul.f32 %v500, %v501
    %v503 = vsub.f32 1.0, %v502
    %v504 = vmul.f32 %v501, %v503
    %v505 = vadd.f32 %v501, %v504
    %vm506 = vweird.f32 %v500
    %vm507 = vweird.f32 %v501
    %vm508 = vmor %vm506, %vm507
    %v509 = vsel %vm508, %v501, %v505
    %v510 = vand.u32 2147483647, %v500
    %vm511 = vcmp.eq.f32.partialorder %v510, 8.507059e+37
    %v512 = vand.u32 %v500, 2147483648
    %v513 = vor.u32 1.1754944e-38, %v512
    %v514 = vsel %vm511, %v513, %v509
    %v515 = vmul.f32 1.0, %v514
    %v516 = vtanh.pop %v496
    %v518 = vrot.slane %v466, 6
    %v520 = vmul.f32 %v515, %v518
    %522 = vrot.lane.b32.xlu0 %v516, 64
    %v523 = vpop.permute.xlu0 %522
    %v525 = vmul.f32 %v515, %v523
    %527 = vrot.lane.b32.xlu0 %v525, 32
    %v528 = vpop.permute.xlu0 %527
    %v530 = vadd.f32 %v520, %v528
    %v531 = vtanh.pop %v530
    %533 = vrot.lane.b32.xlu0 %v531, 64
    %v534 = vpop.permute.xlu0 %533
    %v536 = vmul.f32 %v515, %v534
    %v537 = vpack.c.bf16 %v536, %v536
    %v539 = vrot.slane %v537, 1
    %540 = vrot.lane.b32.xlu0 %v539, 32
    %v541 = vpop.permute.xlu0 %540
    %v543 = vsel %vm162, %v541, 0
    %545 = vmatpush.bf16.msra.mxu0 0
    %546 = vmatpush.bf16.msra.mxu0 0
    %547 = vmatpush.bf16.msra.mxu0 0
    %548 = vmatpush.bf16.msra.mxu0 0
    %549 = vmatpush.bf16.msra.mxu0 0
    %550 = vmatpush.bf16.msra.mxu0 0
    %551 = vmatpush.bf16.msra.mxu0 %v159
    %552 = vmatpush.bf16.msra.mxu0 %v158
    %553 = vmatmul.bf16.gmra.mxu0 %v543
    %v554 = vpop.f32.mrf.mxu0
    %v555 = vadd.f32 0.0, %v554
    %v556 = vpop.f32.mrf.mxu0
    %557 = vdwg.mxu0
    %v559 = vrot.slane %v555, 4
    %v561 = vadd.f32 %v144, %v559
    %v562 = vxor.u32 %v561, 2147483648
    %v563 = vmul.f32 %v562, 1.442695
    %v564 = vpow.pop %v563
    %v565 = vadd.f32 %v564, 1.0
    %v566 = vrcp.pop %v565
    %v567 = vmul.f32 %v565, %v566
    %v568 = vsub.f32 1.0, %v567
    %v569 = vmul.f32 %v566, %v568
    %v570 = vadd.f32 %v566, %v569
    %vm571 = vweird.f32 %v565
    %vm572 = vweird.f32 %v566
    %vm573 = vmor %vm571, %vm572
    %v574 = vsel %vm573, %v566, %v570
    %v575 = vand.u32 2147483647, %v565
    %vm576 = vcmp.eq.f32.partialorder %v575, 8.507059e+37
    %v577 = vand.u32 %v565, 2147483648
    %v578 = vor.u32 1.1754944e-38, %v577
    %v579 = vsel %vm576, %v578, %v574
    %v580 = vmul.f32 1.0, %v579
    %v581 = vtanh.pop %v561
    %v583 = vrot.slane %v530, 6
    %v585 = vmul.f32 %v580, %v583
    %587 = vrot.lane.b32.xlu0 %v581, 64
    %v588 = vpop.permute.xlu0 %587
    %v590 = vmul.f32 %v580, %v588
    %592 = vrot.lane.b32.xlu0 %v590, 32
    %v593 = vpop.permute.xlu0 %592
    %v595 = vadd.f32 %v585, %v593
    %v596 = vtanh.pop %v595
    %598 = vrot.lane.b32.xlu0 %v596, 64
    %v599 = vpop.permute.xlu0 %598
    %v601 = vmul.f32 %v580, %v599
    %v602 = vpack.c.bf16 %v601, %v601
    %v604 = vrot.slane %v602, 2
    %605 = vrot.lane.b32.xlu0 %v604, 32
    %v606 = vpop.permute.xlu0 %605
    %v608 = vsel %vm162, %v606, 0
    %610 = vmatpush.bf16.msra.mxu0 0
    %611 = vmatpush.bf16.msra.mxu0 0
    %612 = vmatpush.bf16.msra.mxu0 0
    %613 = vmatpush.bf16.msra.mxu0 0
    %614 = vmatpush.bf16.msra.mxu0 0
    %615 = vmatpush.bf16.msra.mxu0 0
    %616 = vmatpush.bf16.msra.mxu0 %v159
    %617 = vmatpush.bf16.msra.mxu0 %v158
    %618 = vmatmul.bf16.gmra.mxu0 %v608
    %v619 = vpop.f32.mrf.mxu0
    %v620 = vadd.f32 0.0, %v619
    %v621 = vpop.f32.mrf.mxu0
    %622 = vdwg.mxu0
    %v624 = vrot.slane %v620, 2
    %v626 = vadd.f32 %v144, %v624
    %v627 = vxor.u32 %v626, 2147483648
    %v628 = vmul.f32 %v627, 1.442695
    %v629 = vpow.pop %v628
    %v630 = vadd.f32 %v629, 1.0
    %v631 = vrcp.pop %v630
    %v632 = vmul.f32 %v630, %v631
    %v633 = vsub.f32 1.0, %v632
    %v634 = vmul.f32 %v631, %v633
    %v635 = vadd.f32 %v631, %v634
    %vm636 = vweird.f32 %v630
    %vm637 = vweird.f32 %v631
    %vm638 = vmor %vm636, %vm637
    %v639 = vsel %vm638, %v631, %v635
    %v640 = vand.u32 2147483647, %v630
    %vm641 = vcmp.eq.f32.partialorder %v640, 8.507059e+37
    %v642 = vand.u32 %v630, 2147483648
    %v643 = vor.u32 1.1754944e-38, %v642
    %v644 = vsel %vm641, %v643, %v639
    %v645 = vmul.f32 1.0, %v644
    %v646 = vtanh.pop %v626
    %v648 = vrot.slane %v595, 6
    %v650 = vmul.f32 %v645, %v648
    %652 = vrot.lane.b32.xlu0 %v646, 64
    %v653 = vpop.permute.xlu0 %652
    %v655 = vmul.f32 %v645, %v653
    %657 = vrot.lane.b32.xlu0 %v655, 32
    %v658 = vpop.permute.xlu0 %657
    %v660 = vadd.f32 %v650, %v658
    %v661 = vtanh.pop %v660
    %663 = vrot.lane.b32.xlu0 %v661, 64
    %v664 = vpop.permute.xlu0 %663
    %v666 = vmul.f32 %v645, %v664
    %v667 = vpack.c.bf16 %v666, %v666
    %v668 = vld [vmem:[#allocation8] sm:$0xf]
    %v669 = vld [vmem:[#allocation8 + $0x4] sm:$0xf]
    %v670 = vld [vmem:[#allocation8 + $0x8] sm:$0xf]
    %v671 = vld [vmem:[#allocation8 + $0xc] sm:$0xf]
    %v672 = vld [vmem:[%s5] sm:$0x1]
    %v674 = vperm.slane %v672, 0
    %v677 = vrot.slane %v667, 3
    %678 = vrot.lane.b32.xlu0 %v677, 32
    %v679 = vpop.permute.xlu0 %678
    %v684 = vunpack.c.l.b16 %v668
    %v685 = vunpack.c.l.b16 %v669
    %v686 = vunpack.c.l.b16 %v670
    %v687 = vunpack.c.l.b16 %v671
    %v688 = vpack.c.b16 %v685, %v684
    %v689 = vpack.c.b16 %v687, %v686
    %v693 = vsel %vm162, %v679, 0
    %695 = vmatpush.bf16.msra.mxu0 0
    %696 = vmatpush.bf16.msra.mxu0 0
    %697 = vmatpush.bf16.msra.mxu0 0
    %698 = vmatpush.bf16.msra.mxu0 0
    %699 = vmatpush.bf16.msra.mxu0 0
    %700 = vmatpush.bf16.msra.mxu0 0
    %701 = vmatpush.bf16.msra.mxu0 %v689
    %702 = vmatpush.bf16.msra.mxu0 %v688
    %703 = vmatmul.bf16.gmra.mxu0 %v693
    %v704 = vpop.f32.mrf.mxu0
    %v705 = vadd.f32 %v674, %v704
    %v706 = vpop.f32.mrf.mxu0
    %707 = vdwg.mxu0
    %v708 = vmax.f32 %v705, 0.0
    %v709 = vpack.c.bf16 %v708, %v708
    %v710 = vld [vmem:[#allocation10] sm:$0xf]
    %v711 = vld [vmem:[#allocation10 + $0x4] sm:$0xf]
    %v712 = vld [vmem:[#allocation10 + $0x8] sm:$0xf]
    %v713 = vld [vmem:[#allocation10 + $0xc] sm:$0xf]
    %v714 = vld [vmem:[#allocation10 + $0x10] sm:$0xf]
    %v715 = vld [vmem:[#allocation10 + $0x14] sm:$0xf]
    %v716 = vld [vmem:[#allocation10 + $0x18] sm:$0xf]
    %v717 = vld [vmem:[#allocation10 + $0x1c] sm:$0xf]
    %v718 = vld [vmem:[#allocation10 + $0x20] sm:$0xf]
    %v719 = vld [vmem:[#allocation10 + $0x24] sm:$0xf]
    %v720 = vld [vmem:[#allocation10 + $0x28] sm:$0xf]
    %v721 = vld [vmem:[#allocation10 + $0x2c] sm:$0xf]
    %v722 = vld [vmem:[#allocation10 + $0x30] sm:$0xf]
    %v723 = vld [vmem:[#allocation10 + $0x34] sm:$0xf]
    %v724 = vld [vmem:[#allocation10 + $0x38] sm:$0xf]
    %v725 = vld [vmem:[#allocation10 + $0x3c] sm:$0xf]
    %v726 = vld [vmem:[%s7] sm:$0x1]
    %v728 = vperm.slane %v726, 0
    %v746 = vunpack.c.l.b16 %v710
    %v747 = vunpack.c.l.b16 %v711
    %v748 = vunpack.c.l.b16 %v712
    %v749 = vunpack.c.l.b16 %v713
    %v750 = vunpack.c.l.b16 %v714
    %v751 = vunpack.c.l.b16 %v715
    %v752 = vunpack.c.l.b16 %v716
    %v753 = vunpack.c.l.b16 %v717
    %v754 = vunpack.c.l.b16 %v718
    %v755 = vunpack.c.l.b16 %v719
    %v756 = vunpack.c.l.b16 %v720
    %v757 = vunpack.c.l.b16 %v721
    %v758 = vunpack.c.l.b16 %v722
    %v759 = vunpack.c.l.b16 %v723
    %v760 = vunpack.c.l.b16 %v724
    %v761 = vunpack.c.l.b16 %v725
    %v762 = vpack.c.b16 %v747, %v746
    %v763 = vpack.c.b16 %v749, %v748
    %v764 = vpack.c.b16 %v751, %v750
    %v765 = vpack.c.b16 %v753, %v752
    %v766 = vpack.c.b16 %v755, %v754
    %v767 = vpack.c.b16 %v757, %v756
    %v768 = vpack.c.b16 %v759, %v758
    %v769 = vpack.c.b16 %v761, %v760
    %778 = vmatpush.bf16.msra.mxu0 %v769
    %779 = vmatpush.bf16.msra.mxu0 %v768
    %780 = vmatpush.bf16.msra.mxu0 %v767
    %781 = vmatpush.bf16.msra.mxu0 %v766
    %782 = vmatpush.bf16.msra.mxu0 %v765
    %783 = vmatpush.bf16.msra.mxu0 %v764
    %784 = vmatpush.bf16.msra.mxu0 %v763
    %785 = vmatpush.bf16.msra.mxu0 %v762
    %786 = vmatmul.bf16.gmra.mxu0 %v709
    %v787 = vpop.f32.mrf.mxu0
    %v788 = vadd.f32 %v728, %v787
    %v789 = vpop.f32.mrf.mxu0
    %790 = vdwg.mxu0
    %vm791 = vcmask 1041408
    %v792 = vsel %vm791, %v788, -inf
    %793 = vmax.xlane.f32.xlu0 %v792
    %v794 = vpop.xlane.xlu0 %793
    %v795 = vsub.f32 %v788, %v794
    %v796 = vmul.f32 %v795, 1.442695
    %v797 = vpow.pop %v796
    %v798 = vsel %vm791, %v797, 0.0
    %799 = vadd.xlane.f32.xlu0 %v798
    %v800 = vpop.xlane.xlu0 %799
    %v801 = vrcp.pop %v800
    %v802 = vmul.f32 %v800, %v801
    %v803 = vsub.f32 1.0, %v802
    %v804 = vmul.f32 %v801, %v803
    %v805 = vadd.f32 %v801, %v804
    %vm806 = vweird.f32 %v800
    %vm807 = vweird.f32 %v801
    %vm808 = vmor %vm806, %vm807
    %v809 = vsel %vm808, %v801, %v805
    %v810 = vand.u32 2147483647, %v800
    %vm811 = vcmp.eq.f32.partialorder %v810, 8.507059e+37
    %v812 = vand.u32 %v800, 2147483648
    %v813 = vor.u32 1.1754944e-38, %v812
    %v814 = vsel %vm811, %v813, %v809
    %v815 = vmul.f32 %v797, %v814
    %816 = vst [vmem:[#allocation11] sm:$0x3] %v815
    // Predicated region
    $region54: #{tpu_custom_call.1} parent=1 // pred_check
      _
    $region55: #{tpu_custom_call.1} parent=1 // pred_check_branch
      %818 = sbr.rel (0) target = $region57
    $region56: #{tpu_custom_call.1} parent=1 // pred_region
      %820 = vsyncadd [#allocation4], 0
      %s822 = sshll.u32 [#allocation11], 4
      %s823 = int_to_ptr.vmem [resolvable:$true] %s822
      %s824 = sshll.u32 %s8, 4
      %s825 = int_to_ptr.hbm [resolvable:$true] %s824
      %827 = dma.vmem_to_hbm [thread:$0]  %s823, 32, %s825, [#allocation4]
    $region57: #{tpu_custom_call.1} parent=1 // pred_fallthru
      _
    // Predicated region
    $region58: #{tpu_custom_call.1} parent=1 // pred_check
      _
    $region59: #{tpu_custom_call.1} parent=1 // pred_check_branch
      %829 = sbr.rel (0) target = $region61
    $region60: #{tpu_custom_call.1} parent=1 // pred_region
      %831 = dma.done [#allocation4], 32
    $region61: #{tpu_custom_call.1} parent=1 // pred_fallthru
      _
    %832 = vsyncpa [#allocation3], 1
    %833 = vsyncpa [#allocation6], 1
    %834 = vsyncpa [#allocation9], 1
    %835 = vsyncpa [#allocation4], 1

</llo_original>
